<compile_context>
chip_gen: v6e
topology: v6e:2x2x1
jax: 0.10.0
libtpu: 0.0.40
codegen_flags: <defaults>
</compile_context>

<pallas_src>
import jax
import jax.numpy as jnp
from jax import lax
from jax.experimental import pallas as pl
from jax.experimental.pallas import tpu as pltpu
from jax.scipy.linalg import block_diag


def _fused_conv_tanh_kernel(w_ref, p_ref, b_ref, o_ref):
    # w_ref : (S*Cout, S*R)  block-diagonal im2col weight stack
    # p_ref : (S*R, N)       lane-dense patch matrix (N = B*Ho*Wo on lanes)
    # b_ref : (S*Cout, 1)    stacked biases
    # o_ref : (S*Cout, N)    lane-dense output slab
    acc = jnp.dot(w_ref[...], p_ref[...],
                  preferred_element_type=jnp.float32)      # single MXU push
    acc = acc + b_ref[...].astype(jnp.float32)              # (S*Cout,1) bcast
    o_ref[...] = jnp.tanh(acc).astype(o_ref.dtype)


def cnn_layer_forward(features_nchw, weights, biases, *, kernel_size, stride):
    """features_nchw: [B, S, Cin, H, W]   (PyTorch layout)
       weights      : [S, Cout, Cin, K, K] (stacked PyTorch Conv2d weights)
       biases       : [S, Cout]
       returns      : [B, S, Cout, H_out, W_out]  (matches PyTorch forward)"""
    B, S, Cin, H, W = features_nchw.shape
    Cout = weights.shape[1]
    K = kernel_size
    H_out = (H - K) // stride + 1
    W_out = (W - K) // stride + 1
    N = B * H_out * W_out
    R = K * K * Cin

    # ---- wrapper-side layout plumbing (im2col, not compute) -----------------
    # Patch matrix P: (S*R, N); rows ordered (s, kh, kw, ci), cols (b, ho, wo).
    x = jnp.transpose(features_nchw, (1, 2, 0, 3, 4))        # [S, Cin, B, H, W]
    h_span = stride * (H_out - 1) + 1
    w_span = stride * (W_out - 1) + 1
    taps = [x[:, :, :, kh:kh + h_span:stride, kw:kw + w_span:stride]
            for kh in range(K) for kw in range(K)]            # [S,Cin,B,Ho,Wo]
    patches = jnp.stack(taps, axis=1)                         # [S,K*K,Cin,B,Ho,Wo]
    patches = patches.reshape(S * R, N)                       # (S*R, N)

    # Block-diagonal weight: within each (Cout, R) block, columns are ordered
    # (kh, kw, ci) to match the patch-row ordering above.
    w_im2col = jnp.transpose(weights, (0, 1, 3, 4, 2)).reshape(S, Cout, R)
    w_bd = block_diag(*[w_im2col[s] for s in range(S)])       # (S*Cout, S*R)
    b_col = biases.reshape(S * Cout, 1)

    out_slab = pl.pallas_call(
        _fused_conv_tanh_kernel,
        out_shape=jax.ShapeDtypeStruct((S * Cout, N), features_nchw.dtype),
        grid=(1,),                                            # one fused step
        in_specs=[
            pl.BlockSpec((S * Cout, S * R), lambda i: (0, 0)),
            pl.BlockSpec((S * R, N), lambda i: (0, 0)),
            pl.BlockSpec((S * Cout, 1), lambda i: (0, 0)),
        ],
        out_specs=pl.BlockSpec((S * Cout, N), lambda i: (0, 0)),
        compiler_params=pltpu.CompilerParams(
            dimension_semantics=("arbitrary",)),
    )(w_bd, patches, b_col)

    # Undo the lane-dense slab layout -> PyTorch [B, S, Cout, H_out, W_out].
    out = out_slab.reshape(S, Cout, B, H_out, W_out)
    return jnp.transpose(out, (2, 0, 1, 3, 4))


def _reference(features_nchw, weights, biases, *, kernel_size, stride):
    """Plain-JAX reference using lax.conv_general_dilated (matches PyTorch)."""
    B, S, Cin, H, W = features_nchw.shape
    outs = []
    for i in range(S):
        o = lax.conv_general_dilated(
            features_nchw[:, i],                      # [B, Cin, H, W]
            weights[i],                               # [Cout, Cin, K, K]
            window_strides=(stride, stride),
            padding="VALID",
            dimension_numbers=("NCHW", "OIHW", "NCHW"))
        o = o + biases[i][None, :, None, None]
        outs.append(o[:, None])
    return jnp.tanh(jnp.concatenate(outs, axis=1))


if __name__ == "__main__":
    # features [B, num_sim_matrices, in_channels, H, W]
    B, S, Cin, Cout, H, W = 2, 3, 4, 8, 16, 16
    kernel_size = 3

    key = jax.random.PRNGKey(0)
    k1, k2, k3 = jax.random.split(key, 3)
    features = jax.random.normal(k1, (B, S, Cin, H, W), dtype=jnp.float32)
    # Deterministic synthetic parameters (one Conv2d per sim matrix).
    fan_in = Cin * kernel_size * kernel_size
    bound = 1.0 / (fan_in ** 0.5)
    weights = jax.random.uniform(k2, (S, Cout, Cin, kernel_size, kernel_size),
                                 minval=-bound, maxval=bound, dtype=jnp.float32)
    biases = jax.random.uniform(k3, (S, Cout), minval=-bound, maxval=bound,
                                dtype=jnp.float32)

    # stride=1 and stride=2 paths both checked (review: exercise stride>1 too).
    for stride in (1, 2):
        out = cnn_layer_forward(features, weights, biases,
                                kernel_size=kernel_size, stride=stride)
        out = jax.block_until_ready(out)
        ref = _reference(features, weights, biases,
                         kernel_size=kernel_size, stride=stride)
        Ho = (H - kernel_size) // stride + 1
        Wo = (W - kernel_size) // stride + 1
        assert out.shape == ref.shape == (B, S, Cout, Ho, Wo)
        assert jnp.allclose(out, ref, atol=1e-5, rtol=1e-5)

    print("KERNEL_OK")
</pallas_src>

<mosaic_0001>
module attributes {stable_mosaic.version = 11 : i64} {
  func.func @_fused_conv_tanh_kernel(%arg0: i32, %arg1: memref<24x108xf32, #tpu.memory_space<vmem>>, %arg2: memref<108x392xf32, #tpu.memory_space<vmem>>, %arg3: memref<24x1xf32, #tpu.memory_space<vmem>>, %arg4: memref<24x392xf32, #tpu.memory_space<vmem>>) attributes {dimension_semantics = [#tpu.dimension_semantics<arbitrary>], iteration_bounds = array<i64: 1>, scalar_prefetch = 0 : i64, scratch_operands = 0 : i64, tpu.core_type = #tpu.core_type<tc>, window_params = [{pipeline_mode = #tpu.pipeline_mode<synchronous>, transform_indices = @transform_0, window_bounds = array<i64: 24, 108>}, {pipeline_mode = #tpu.pipeline_mode<synchronous>, transform_indices = @transform_1, window_bounds = array<i64: 108, 392>}, {pipeline_mode = #tpu.pipeline_mode<synchronous>, transform_indices = @transform_2, window_bounds = array<i64: 24, 1>}, {pipeline_mode = #tpu.pipeline_mode<synchronous>, transform_indices = @transform_3, window_bounds = array<i64: 24, 392>}]} {
    %c0 = arith.constant 0 : index
    %c0_0 = arith.constant 0 : index
    %0 = vector.load %arg1[%c0, %c0_0] : memref<24x108xf32, #tpu.memory_space<vmem>>, vector<24x108xf32>
    %c0_1 = arith.constant 0 : index
    %c0_2 = arith.constant 0 : index
    %1 = vector.load %arg2[%c0_1, %c0_2] : memref<108x392xf32, #tpu.memory_space<vmem>>, vector<108x392xf32>
    %cst = arith.constant dense<0.000000e+00> : vector<24x392xf32>
    %2 = tpu.matmul %0, %1, %cst {dimension_numbers = #tpu.dot_dimension_numbers<[1], [0], [0], [1], [0, 0, 1, 1], [], []>} : vector<24x108xf32>, vector<108x392xf32>, vector<24x392xf32> -> vector<24x392xf32>
    %c0_3 = arith.constant 0 : index
    %c0_4 = arith.constant 0 : index
    %3 = vector.load %arg3[%c0_3, %c0_4] : memref<24x1xf32, #tpu.memory_space<vmem>>, vector<24x1xf32>
    %4 = vector.broadcast %3 : vector<24x1xf32> to vector<24x392xf32>
    %5 = arith.addf %2, %4 : vector<24x392xf32>
    %6 = math.tanh %5 : vector<24x392xf32>
    %c0_5 = arith.constant 0 : index
    %c0_6 = arith.constant 0 : index
    %7 = vector.load %arg4[%c0_5, %c0_6] : memref<24x392xf32, #tpu.memory_space<vmem>>, vector<24x392xf32>
    tpu.vector_store %arg4[%c0_5, %c0_6], %6 {strides = array<i32>} : memref<24x392xf32, #tpu.memory_space<vmem>>, vector<24x392xf32>,
    return
  }
  func.func @transform_0(%arg0: i32) -> (i32, i32) {
    %c0_i32 = arith.constant 0 : i32
    %c0_i32_0 = arith.constant 0 : i32
    %c0_i32_1 = arith.constant 0 : i32
    return %c0_i32, %c0_i32_0 : i32, i32
  }
  func.func @transform_1(%arg0: i32) -> (i32, i32) {
    %c0_i32 = arith.constant 0 : i32
    %c0_i32_0 = arith.constant 0 : i32
    %c0_i32_1 = arith.constant 0 : i32
    return %c0_i32, %c0_i32_0 : i32, i32
  }
  func.func @transform_2(%arg0: i32) -> (i32, i32) {
    %c0_i32 = arith.constant 0 : i32
    %c0_i32_0 = arith.constant 0 : i32
    %c0_i32_1 = arith.constant 0 : i32
    return %c0_i32, %c0_i32_0 : i32, i32
  }
  func.func @transform_3(%arg0: i32) -> (i32, i32) {
    %c0_i32 = arith.constant 0 : i32
    %c0_i32_0 = arith.constant 0 : i32
    %c0_i32_1 = arith.constant 0 : i32
    return %c0_i32, %c0_i32_0 : i32, i32
  }
}

</mosaic_0001>

<llo_original>
// kernel: tpu_custom_call.1
$region0: #{tpu_custom_call.1}
  #allocation0 [shape = 'u32[]', space=smem, size = 0x4, offset = 0x4, fixed_abs, tag = 'smem constant byte address 0x4 - core index']
  #allocation1 [shape = 'u32[144,128]{1,0:T(1,128)}', space=vmem, size = 0x12000, scoped, tag = 'internal scratch']
  %s0 = inlined_call_operand.vmem [shape: f32[24,108], index: 0, kind: input, shape index: {}]
  %s1 = inlined_call_operand.vmem [shape: f32[108,392], index: 1, kind: input, shape index: {}]
  %s2 = inlined_call_operand.vmem [shape: f32[24,1], index: 2, kind: input, shape index: {}]
  %s3 = inlined_call_operand.hbm [shape: f32[24,392], index: 3, kind: output, shape index: {}]
  %s4 = sld [smem:[#allocation0]]
  $region22: #{tpu_custom_call.1} parent=0
    _
  %s6 = ssub.s32 1, %s4
  %s7 = scalar_select 0, %s6, %s4
  $region1: #{tpu_custom_call.1} parent=0
    #allocation2 [shape = 'u8[49152]{0}', space=vmem, size = 0xc000, scoped, tag = 'output window, operand 0, single buffered']
    #allocation3 [shape = 's32[1]{0}', space=sflag, size = 0x4, scoped, tag = 'scoped memory for tpu_custom_call.1']
    %8 = vsyncpa [#allocation3], 0
    // Predicated region
    $region2: #{tpu_custom_call.1} parent=1 // pred_check
      _
    $region3: #{tpu_custom_call.1} parent=1 // pred_check_branch
      %10 = sbr.rel (0) target = $region5
    $region4: #{tpu_custom_call.1} parent=1 // pred_region
      _
    $region5: #{tpu_custom_call.1} parent=1 // pred_fallthru
      _
    // Predicated region
    $region6: #{tpu_custom_call.1} parent=1 // pred_check
      _
    $region7: #{tpu_custom_call.1} parent=1 // pred_check_branch
      %12 = sbr.rel (0) target = $region9
    $region8: #{tpu_custom_call.1} parent=1 // pred_region
      _
    $region9: #{tpu_custom_call.1} parent=1 // pred_fallthru
      _
    // Predicated region
    $region10: #{tpu_custom_call.1} parent=1 // pred_check
      _
    $region11: #{tpu_custom_call.1} parent=1 // pred_check_branch
      %14 = sbr.rel (0) target = $region13
    $region12: #{tpu_custom_call.1} parent=1 // pred_region
      _
    $region13: #{tpu_custom_call.1} parent=1 // pred_fallthru
      _
    %v15 = vld [vmem:[%s0] sm:$0xff]
    %v16 = vld [vmem:[%s0 + $0x8] sm:$0xff]
    %v17 = vld [vmem:[%s0 + $0x10] sm:$0xff]
    %v18 = vld [vmem:[%s1] sm:$0xff]
    %v19 = vld [vmem:[%s1 + $0x8] sm:$0xff]
    %v20 = vld [vmem:[%s1 + $0x10] sm:$0xff]
    %v21 = vld [vmem:[%s1 + $0x18] sm:$0xff]
    %v22 = vld [vmem:[%s1 + $0x20] sm:$0xff]
    %v23 = vld [vmem:[%s1 + $0x28] sm:$0xff]
    %v24 = vld [vmem:[%s1 + $0x30] sm:$0xff]
    %v25 = vld [vmem:[%s1 + $0x38] sm:$0xff]
    %v26 = vld [vmem:[%s1 + $0x40] sm:$0xff]
    %v27 = vld [vmem:[%s1 + $0x48] sm:$0xff]
    %v28 = vld [vmem:[%s1 + $0x50] sm:$0xff]
    %v29 = vld [vmem:[%s1 + $0x58] sm:$0xff]
    %v30 = vld [vmem:[%s1 + $0x60] sm:$0xff]
    %v31 = vld [vmem:[%s1 + $0x68] sm:$0xff]
    %v32 = vld [vmem:[%s1 + $0x70] sm:$0xff]
    %v33 = vld [vmem:[%s1 + $0x78] sm:$0xff]
    %v34 = vld [vmem:[%s1 + $0x80] sm:$0xff]
    %v35 = vld [vmem:[%s1 + $0x88] sm:$0xff]
    %v36 = vld [vmem:[%s1 + $0x90] sm:$0xff]
    %v37 = vld [vmem:[%s1 + $0x98] sm:$0xff]
    %v38 = vld [vmem:[%s1 + $0xa0] sm:$0xff]
    %v39 = vld [vmem:[%s1 + $0xa8] sm:$0xff]
    %v40 = vld [vmem:[%s1 + $0xb0] sm:$0xff]
    %v41 = vld [vmem:[%s1 + $0xb8] sm:$0xff]
    %v42 = vld [vmem:[%s1 + $0xc0] sm:$0xff]
    %v43 = vld [vmem:[%s1 + $0xc8] sm:$0xff]
    %v44 = vld [vmem:[%s1 + $0xd0] sm:$0xff]
    %v45 = vld [vmem:[%s1 + $0xd8] sm:$0xff]
    %v46 = vld [vmem:[%s1 + $0xe0] sm:$0xff]
    %v47 = vld [vmem:[%s1 + $0xe8] sm:$0xff]
    %v48 = vld [vmem:[%s1 + $0xf0] sm:$0xff]
    %v49 = vld [vmem:[%s1 + $0xf8] sm:$0xff]
    %v50 = vld [vmem:[%s1 + $0x100] sm:$0xff]
    %v51 = vld [vmem:[%s1 + $0x108] sm:$0xff]
    %v52 = vld [vmem:[%s1 + $0x110] sm:$0xff]
    %v53 = vld [vmem:[%s1 + $0x118] sm:$0xff]
    %v54 = vld [vmem:[%s1 + $0x120] sm:$0xff]
    %v55 = vld [vmem:[%s1 + $0x128] sm:$0xff]
    %v56 = vld [vmem:[%s1 + $0x130] sm:$0xff]
    %v57 = vld [vmem:[%s1 + $0x138] sm:$0xff]
    %v58 = vld [vmem:[%s1 + $0x140] sm:$0xff]
    %v59 = vld [vmem:[%s1 + $0x148] sm:$0xff]
    %v60 = vld [vmem:[%s1 + $0x150] sm:$0xff]
    %v61 = vld [vmem:[%s1 + $0x158] sm:$0xff]
    %v62 = vld [vmem:[%s1 + $0x160] sm:$0xff]
    %v63 = vld [vmem:[%s1 + $0x168] sm:$0xff]
    %v64 = vld [vmem:[%s1 + $0x170] sm:$0xff]
    %v65 = vld [vmem:[%s1 + $0x178] sm:$0xff]
    %v66 = vld [vmem:[%s1 + $0x180] sm:$0xff]
    %v67 = vld [vmem:[%s1 + $0x188] sm:$0xff]
    %v68 = vld [vmem:[%s1 + $0x190] sm:$0xff]
    %v69 = vld [vmem:[%s1 + $0x198] sm:$0xff]
    %v70 = vld [vmem:[%s1 + $0x1a0] sm:$0xf]
    %v71 = vld [vmem:[%s1 + $0x1a8] sm:$0xf]
    %v72 = vld [vmem:[%s1 + $0x1b0] sm:$0xf]
    %v73 = vld [vmem:[%s1 + $0x1b8] sm:$0xf]
    %v74 = vld [vmem:[%s2] sm:$0xff]
    %v75 = vld [vmem:[%s2 + $0x8] sm:$0xff]
    %v76 = vld [vmem:[%s2 + $0x10] sm:$0xff]
    %78 = vset.pattern.permute.xlu0 0
    %79 = vperm.xlu0 %78, %v74
    %v80 = vpop.permute.xlu0 %79
    %83 = vset.pattern.permute.xlu0 0
    %84 = vperm.xlu0 %83, %v75
    %v85 = vpop.permute.xlu0 %84
    %88 = vset.pattern.permute.xlu0 0
    %89 = vperm.xlu0 %88, %v76
    %v90 = vpop.permute.xlu0 %89
    %vm92 = vcmask 883712
    %v94 = vsel %vm92, %v15, 0
    %v97 = vsel %vm92, %v16, 0
    %v100 = vsel %vm92, %v17, 0
    %vm102 = vcmask 1043456
    %v104 = vsel %vm102, %v70, 0
    %v107 = vsel %vm102, %v71, 0
    %v110 = vsel %vm102, %v72, 0
    %v113 = vsel %vm102, %v73, 0
    %115 = vmatprep.subr.mxu0 0.0
    %116 = vmatpush1.msra.mxu0 0.0
    %117 = vmatprep.subr.mxu0 0.0
    %118 = vmatpush1.msra.mxu0 0.0
    %119 = vmatprep.subr.mxu0 %v107
    %120 = vmatpush1.msra.mxu0 %v104
    %121 = vmatprep.subr.mxu0 %v67
    %122 = vmatpush1.msra.mxu0 %v66
    %123 = vmatprep.subr.mxu0 %v63
    %124 = vmatpush1.msra.mxu0 %v62
    %125 = vmatprep.subr.mxu0 %v59
    %126 = vmatpush1.msra.mxu0 %v58
    %127 = vmatprep.subr.mxu0 %v55
    %128 = vmatpush1.msra.mxu0 %v54
    %129 = vmatprep.subr.mxu0 %v51
    %130 = vmatpush1.msra.mxu0 %v50
    %131 = vmatprep.subr.mxu0 %v47
    %132 = vmatpush1.msra.mxu0 %v46
    %133 = vmatprep.subr.mxu0 %v43
    %134 = vmatpush1.msra.mxu0 %v42
    %135 = vmatprep.subr.mxu0 %v39
    %136 = vmatpush1.msra.mxu0 %v38
    %137 = vmatprep.subr.mxu0 %v35
    %138 = vmatpush1.msra.mxu0 %v34
    %139 = vmatprep.subr.mxu0 %v31
    %140 = vmatpush1.msra.mxu0 %v30
    %141 = vmatprep.subr.mxu0 %v27
    %142 = vmatpush1.msra.mxu0 %v26
    %143 = vmatprep.subr.mxu0 %v23
    %144 = vmatpush1.msra.mxu0 %v22
    %145 = vmatprep.subr.mxu0 %v19
    %146 = vmatpush1.msra.mxu0 %v18
    %147 = vmatprep.subr.mxu0 0.0
    %148 = vmatpush2.msra.mxu0 0.0
    %149 = vmatprep.subr.mxu0 0.0
    %150 = vmatpush2.msra.mxu0 0.0
    %151 = vmatprep.subr.mxu0 0.0
    %152 = vmatpush2.msra.mxu0 0.0
    %153 = vmatprep.subr.mxu0 0.0
    %154 = vmatpush2.msra.mxu0 0.0
    %155 = vmatprep.subr.mxu0 0.0
    %156 = vmatpush2.msra.mxu0 0.0
    %157 = vmatprep.subr.mxu0 0.0
    %158 = vmatpush2.msra.mxu0 0.0
    %159 = vmatprep.subr.mxu0 0.0
    %160 = vmatpush2.msra.mxu0 0.0
    %161 = vmatprep.subr.mxu0 0.0
    %162 = vmatpush2.msra.mxu0 0.0
    %163 = vmatprep.subr.mxu0 0.0
    %164 = vmatpush2.msra.mxu0 0.0
    %165 = vmatprep.subr.mxu0 0.0
    %166 = vmatpush2.msra.mxu0 0.0
    %167 = vmatprep.subr.mxu0 0.0
    %168 = vmatpush2.msra.mxu0 0.0
    %169 = vmatprep.subr.mxu0 0.0
    %170 = vmatpush2.msra.mxu0 0.0
    %171 = vmatprep.subr.mxu0 0.0
    %172 = vmatpush2.msra.mxu0 0.0
    %173 = vmatprep.subr.mxu0 0.0
    %174 = vmatpush2.msra.mxu0 0.0
    %175 = vmatprep.subr.mxu0 0.0
    %176 = vmatpush2.msra.mxu0 0.0
    %177 = vmatprep.subr.mxu0 0.0
    %178 = vmatpush2.msra.mxu0 0.0
    %179 = vmatprep.mubr.f32.mxu0 0.0
    %180 = vmatmul.mubr.f32.gmra.mxu0 %v94
    %v181 = vpop.f32.mrf.mxu0
    %v182 = vadd.f32 %v80, %v181
    %v183 = vpop.f32.mrf.mxu0
    %v184 = vadd.f32 %v80, %v183
    %185 = vmatprep.mubr.f32.mxu0 0.0
    %186 = vmatmul.mubr.f32.gmra.mxu0 %v97
    %v187 = vpop.f32.mrf.mxu0
    %v188 = vadd.f32 %v85, %v187
    %v189 = vpop.f32.mrf.mxu0
    %v190 = vadd.f32 %v85, %v189
    %191 = vmatprep.mubr.f32.mxu0 0.0
    %192 = vmatmul.mubr.f32.gmra.mxu0 %v100
    %v193 = vpop.f32.mrf.mxu0
    %v194 = vadd.f32 %v90, %v193
    %v195 = vpop.f32.mrf.mxu0
    %v196 = vadd.f32 %v90, %v195
    %197 = vdwg.mxu0
    %198 = vmatprep.subr.mxu0 0.0
    %199 = vmatpush1.msra.mxu0 0.0
    %200 = vmatprep.subr.mxu0 0.0
    %201 = vmatpush1.msra.mxu0 0.0
    %202 = vmatprep.subr.mxu0 %v113
    %203 = vmatpush1.msra.mxu0 %v110
    %204 = vmatprep.subr.mxu0 %v69
    %205 = vmatpush1.msra.mxu0 %v68
    %206 = vmatprep.subr.mxu0 %v65
    %207 = vmatpush1.msra.mxu0 %v64
    %208 = vmatprep.subr.mxu0 %v61
    %209 = vmatpush1.msra.mxu0 %v60
    %210 = vmatprep.subr.mxu0 %v57
    %211 = vmatpush1.msra.mxu0 %v56
    %212 = vmatprep.subr.mxu0 %v53
    %213 = vmatpush1.msra.mxu0 %v52
    %214 = vmatprep.subr.mxu0 %v49
    %215 = vmatpush1.msra.mxu0 %v48
    %216 = vmatprep.subr.mxu0 %v45
    %217 = vmatpush1.msra.mxu0 %v44
    %218 = vmatprep.subr.mxu0 %v41
    %219 = vmatpush1.msra.mxu0 %v40
    %220 = vmatprep.subr.mxu0 %v37
    %221 = vmatpush1.msra.mxu0 %v36
    %222 = vmatprep.subr.mxu0 %v33
    %223 = vmatpush1.msra.mxu0 %v32
    %224 = vmatprep.subr.mxu0 %v29
    %225 = vmatpush1.msra.mxu0 %v28
    %226 = vmatprep.subr.mxu0 %v25
    %227 = vmatpush1.msra.mxu0 %v24
    %228 = vmatprep.subr.mxu0 %v21
    %229 = vmatpush1.msra.mxu0 %v20
    %230 = vmatprep.subr.mxu0 0.0
    %231 = vmatpush2.msra.mxu0 0.0
    %232 = vmatprep.subr.mxu0 0.0
    %233 = vmatpush2.msra.mxu0 0.0
    %234 = vmatprep.subr.mxu0 0.0
    %235 = vmatpush2.msra.mxu0 0.0
    %236 = vmatprep.subr.mxu0 0.0
    %237 = vmatpush2.msra.mxu0 0.0
    %238 = vmatprep.subr.mxu0 0.0
    %239 = vmatpush2.msra.mxu0 0.0
    %240 = vmatprep.subr.mxu0 0.0
    %241 = vmatpush2.msra.mxu0 0.0
    %242 = vmatprep.subr.mxu0 0.0
    %243 = vmatpush2.msra.mxu0 0.0
    %244 = vmatprep.subr.mxu0 0.0
    %245 = vmatpush2.msra.mxu0 0.0
    %246 = vmatprep.subr.mxu0 0.0
    %247 = vmatpush2.msra.mxu0 0.0
    %248 = vmatprep.subr.mxu0 0.0
    %249 = vmatpush2.msra.mxu0 0.0
    %250 = vmatprep.subr.mxu0 0.0
    %251 = vmatpush2.msra.mxu0 0.0
    %252 = vmatprep.subr.mxu0 0.0
    %253 = vmatpush2.msra.mxu0 0.0
    %254 = vmatprep.subr.mxu0 0.0
    %255 = vmatpush2.msra.mxu0 0.0
    %256 = vmatprep.subr.mxu0 0.0
    %257 = vmatpush2.msra.mxu0 0.0
    %258 = vmatprep.subr.mxu0 0.0
    %259 = vmatpush2.msra.mxu0 0.0
    %260 = vmatprep.subr.mxu0 0.0
    %261 = vmatpush2.msra.mxu0 0.0
    %262 = vmatprep.mubr.f32.mxu0 0.0
    %263 = vmatmul.mubr.f32.gmra.mxu0 %v94
    %v264 = vpop.f32.mrf.mxu0
    %v265 = vadd.f32 %v80, %v264
    %v266 = vpop.f32.mrf.mxu0
    %v267 = vadd.f32 %v80, %v266
    %268 = vmatprep.mubr.f32.mxu0 0.0
    %269 = vmatmul.mubr.f32.gmra.mxu0 %v97
    %v270 = vpop.f32.mrf.mxu0
    %v271 = vadd.f32 %v85, %v270
    %v272 = vpop.f32.mrf.mxu0
    %v273 = vadd.f32 %v85, %v272
    %274 = vmatprep.mubr.f32.mxu0 0.0
    %275 = vmatmul.mubr.f32.gmra.mxu0 %v100
    %v276 = vpop.f32.mrf.mxu0
    %v277 = vadd.f32 %v90, %v276
    %v278 = vpop.f32.mrf.mxu0
    %v279 = vadd.f32 %v90, %v278
    %280 = vdwg.mxu0
    %v281 = vtanh.pop %v182
    %v282 = vtanh.pop %v184
    %v283 = vtanh.pop %v265
    %v284 = vtanh.pop %v267
    %v285 = vtanh.pop %v188
    %v286 = vtanh.pop %v190
    %v287 = vtanh.pop %v271
    %v288 = vtanh.pop %v273
    %v289 = vtanh.pop %v194
    %v290 = vtanh.pop %v196
    %v291 = vtanh.pop %v277
    %v292 = vtanh.pop %v279
    %293 = vst [vmem:[#allocation2] sm:$0xff] %v281
    %294 = vst [vmem:[#allocation2 + $0x8] sm:$0xff] %v282
    %295 = vst [vmem:[#allocation2 + $0x10] sm:$0xff] %v283
    %vm296 = vcmask 64512
    %297 = vst.msk [vmem:[#allocation2 + $0x18] sm:$0xff] %vm296, %v284
    %298 = vst [vmem:[#allocation2 + $0x20] sm:$0xff] %v285
    %299 = vst [vmem:[#allocation2 + $0x28] sm:$0xff] %v286
    %300 = vst [vmem:[#allocation2 + $0x30] sm:$0xff] %v287
    %301 = vst.msk [vmem:[#allocation2 + $0x38] sm:$0xff] %vm296, %v288
    %302 = vst [vmem:[#allocation2 + $0x40] sm:$0xff] %v289
    %303 = vst [vmem:[#allocation2 + $0x48] sm:$0xff] %v290
    %304 = vst [vmem:[#allocation2 + $0x50] sm:$0xff] %v291
    %305 = vst.msk [vmem:[#allocation2 + $0x58] sm:$0xff] %vm296, %v292
    // Predicated region
    $region14: #{tpu_custom_call.1} parent=1 // pred_check
      _
    $region15: #{tpu_custom_call.1} parent=1 // pred_check_branch
      %307 = sbr.rel (0) target = $region17
    $region16: #{tpu_custom_call.1} parent=1 // pred_region
      %s309 = ssub.s32 1536, 1536
      %310 = vsyncadd [#allocation3], %s309
      %s311 = sshll.u32 [#allocation2], 4
      %s312 = int_to_ptr.vmem [resolvable:$true] %s311
      %317 = dma.vmem_to_hbm [thread:$0]  %s312, 1536, %s3, [#allocation3], 512, 512, 32
    $region17: #{tpu_custom_call.1} parent=1 // pred_fallthru
      _
    // Predicated region
    $region18: #{tpu_custom_call.1} parent=1 // pred_check
      _
    $region19: #{tpu_custom_call.1} parent=1 // pred_check_branch
      %319 = sbr.rel (0) target = $region21
    $region20: #{tpu_custom_call.1} parent=1 // pred_region
      %320 = dma.done [#allocation3], 1536
    $region21: #{tpu_custom_call.1} parent=1 // pred_fallthru
      _
    %321 = vsyncpa [#allocation3], 1

</llo_original>
